<compile_context>
chip_gen: v7x
topology: tpu7x:2x2x1
jax: 0.10.0
libtpu: 0.0.40
codegen_flags: <defaults>
</compile_context>

<pallas_src>
import functools

import jax
import jax.numpy as jnp
from jax import lax
from jax.experimental import pallas as pl
from jax.experimental.pallas import tpu as pltpu


def _sepconv_kernel(x_ref, w1b_ref, b1_ref, w2bd_ref, b2_ref, out_ref, *, K, W, L):
    """One batch-group per grid step, batch stacked on sublanes.

    x_ref    : (R, L)            input, R = Nb*Cin, lane axis = flattened H*W
    w1b_ref  : (K*K, R, L)       depthwise taps, BN1 scale AND border masks
                                 pre-folded, pre-broadcast over L
    b1_ref   : (R, 1)            folded BN1 bias
    w2bd_ref : (Nb*Cout, R)      block-diagonal pointwise weights, BN2 scale folded
    b2_ref   : (Nb*Cout, 1)      folded BN2 bias
    out_ref  : (Nb*Cout, L)      output (lane-dense)
    """
    pad = (K - 1) // 2
    xf = x_ref[...].astype(jnp.float32)                      # (R, L)

    # --- depthwise KxK conv, stride 1, "same" zero padding ---
    # Each tap: circular lane roll of the flat spatial axis (XLU) followed by
    # an elementwise FMA (VALU).  Border wrap-around is already zeroed out in
    # the pre-masked tap weights, so no compares/selects are needed here.
    acc = None
    for dh in range(K):
        rh = dh - pad
        for dw in range(K):
            rw = dw - pad
            s = rh * W + rw                                  # flat source offset
            shifted = pltpu.roll(xf, shift=(-s) % L, axis=1) if s != 0 else xf
            term = shifted * w1b_ref[dh * K + dw].astype(jnp.float32)   # (R, L)
            acc = term if acc is None else acc + term

    # --- BN1 bias (scale folded into taps) + ReLU ---
    h1 = jnp.maximum(acc + b1_ref[...].astype(jnp.float32), 0.0)        # (R, L)

    # --- pointwise 1x1 conv + BN2 (scale folded) on the MXU ---
    y = jnp.dot(w2bd_ref[...].astype(jnp.float32), h1,
                preferred_element_type=jnp.float32)                     # (Nb*Cout, L)
    y = y + b2_ref[...].astype(jnp.float32)

    out_ref[...] = y.astype(out_ref.dtype)


def _default_grid_steps(n):
    """1 fat step on single-TC chips (v5e/v6e); 2 parallel steps on dual-TC v7x."""
    cores = 1
    try:
        kind = jax.devices()[0].device_kind.lower()
        if "v7" in kind:
            cores = 2
    except Exception:  # pragma: no cover - best effort, fallback is always valid
        pass
    g = min(cores, max(n, 1))
    while g > 1 and n % g != 0:
        g -= 1
    return g


def sepconv_pallas(x_nchw, w1_taps, s1, b1, w2, s2, b2, *,
                   kernel_size, stride=1, grid_steps=None):
    """x_nchw: (N, Cin, H, W); w1_taps: (K*K, Cin); w2: (Cin, Cout);
    s1/b1: (1, Cin) folded BN1; s2/b2: (1, Cout) folded BN2."""
    if stride != 1:
        # TODO(synk): stride > 1 would need strided output indexing in the tap loop.
        raise NotImplementedError("sepconv_pallas only supports stride == 1")
    K = kernel_size
    if K % 2 != 1:
        raise NotImplementedError("sepconv_pallas only supports odd kernel_size")

    N, Cin, H, W = x_nchw.shape
    Cout = w2.shape[-1]
    L = H * W
    if L % 128 != 0:
        # Lane-dense layout (and the roll-based taps) assume a 128-aligned lane axis.
        raise NotImplementedError("sepconv_pallas requires H*W to be a multiple of 128")

    G = grid_steps if grid_steps is not None else _default_grid_steps(N)
    Nb = N // G                       # batch elements per grid step
    R = Nb * Cin                      # sublane rows per step

    # Free (contiguous) reshape: batch stacked on sublanes, lane axis = H*W.
    x_flat = x_nchw.reshape(N * Cin, L)

    # --- host-side weight prep -------------------------------------------
    pad = (K - 1) // 2
    p = jnp.arange(L, dtype=jnp.int32)
    h_idx, w_idx = p // W, p % W
    tap_masks = []
    for dh in range(K):
        rh = dh - pad
        for dw in range(K):
            rw = dw - pad
            tap_masks.append((h_idx + rh >= 0) & (h_idx + rh < H)
                             & (w_idx + rw >= 0) & (w_idx + rw < W))
    mask = jnp.stack(tap_masks).astype(jnp.float32)           # (K*K, L)

    # Fold BN1 scale and the zero-padding masks into pre-broadcast taps.
    w1f = (w1_taps * s1).astype(jnp.float32)                  # (K*K, Cin)
    w1b = w1f[:, :, None] * mask[:, None, :]                  # (K*K, Cin, L)
    w1b = jnp.tile(w1b, (1, Nb, 1))                           # (K*K, R, L)
    b1c = jnp.tile(jnp.reshape(b1, (Cin, 1)).astype(jnp.float32), (Nb, 1))   # (R, 1)

    # Fold BN2 scale into the pointwise weights; block-diagonal over the
    # in-step batch so the whole pointwise conv is one MXU matmul.
    w2s = jnp.transpose(w2 * s2).astype(jnp.float32)           # (Cout, Cin)
    w2bd = jnp.kron(jnp.eye(Nb, dtype=jnp.float32), w2s)       # (Nb*Cout, Nb*Cin)
    b2c = jnp.tile(jnp.reshape(b2, (Cout, 1)).astype(jnp.float32), (Nb, 1))  # (Nb*Cout, 1)

    kernel = functools.partial(_sepconv_kernel, K=K, W=W, L=L)

    bytes_accessed = 4 * (x_flat.size + N * Cout * L
                          + w1b.size + b1c.size + w2bd.size + b2c.size)
    cost = pl.CostEstimate(
        flops=2 * N * L * (Cin * K * K + Cin * Cout),
        transcendentals=0,
        bytes_accessed=bytes_accessed)

    out_flat = pl.pallas_call(
        kernel,
        out_shape=jax.ShapeDtypeStruct((N * Cout, L), x_nchw.dtype),
        grid_spec=pltpu.PrefetchScalarGridSpec(
            num_scalar_prefetch=0,
            grid=(G,),
            in_specs=[
                pl.BlockSpec((R, L), lambda g: (g, 0)),
                pl.BlockSpec((K * K, R, L), lambda g: (0, 0, 0)),
                pl.BlockSpec((R, 1), lambda g: (0, 0)),
                pl.BlockSpec((Nb * Cout, R), lambda g: (0, 0)),
                pl.BlockSpec((Nb * Cout, 1), lambda g: (0, 0)),
            ],
            out_specs=pl.BlockSpec((Nb * Cout, L), lambda g: (g, 0)),
        ),
        compiler_params=pltpu.CompilerParams(
            dimension_semantics=("parallel",)),
        cost_estimate=cost,
    )(x_flat, w1b, b1c, w2bd, b2c)

    return out_flat.reshape(N, Cout, H, W)


def sepconv_ref(x_nchw, w1_taps, s1, b1, w2, s2, b2, *, kernel_size):
    """Pure-JAX reference (inference-mode BN folded identically), NCHW in/out."""
    K = kernel_size
    Cin = x_nchw.shape[1]
    pad = (K - 1) // 2
    x = jnp.transpose(x_nchw, (0, 2, 3, 1))                 # NHWC
    rhs = w1_taps.reshape(K, K, 1, Cin)                     # HWIO (depthwise)
    y = lax.conv_general_dilated(
        x, rhs, window_strides=(1, 1),
        padding=[(pad, pad), (pad, pad)],
        dimension_numbers=("NHWC", "HWIO", "NHWC"),
        feature_group_count=Cin,
        precision=lax.Precision.HIGHEST)
    y = jnp.maximum(y * s1 + b1, 0.0)
    y = jnp.einsum("nhwc,cd->nhwd", y, w2, precision="highest")
    y = y * s2 + b2
    return jnp.transpose(y, (0, 3, 1, 2))                   # NCHW


if __name__ == "__main__":
    # Module config: SepConv(input_size=16, in_channels=8, out_channels=16,
    #                        expansion=1 (unused), stride=1, kernel_size=3)
    N, Cin, Cout, H, W, K = 2, 8, 16, 16, 16, 3
    eps = 1e-5

    keys = jax.random.split(jax.random.PRNGKey(0), 12)

    # Input in PyTorch's NCHW layout (used directly; no NHWC transpose needed).
    x = jax.random.normal(keys[0], (N, Cin, H, W), jnp.float32)

    # conv1: depthwise KxK, groups=Cin. PyTorch weight (Cin,1,K,K); here (K*K, Cin).
    w1_taps = jax.random.normal(keys[1], (K * K, Cin), jnp.float32) * jnp.sqrt(2.0 / (K * K))
    # conv2: 1x1, groups=1. PyTorch weight (Cout,Cin,1,1); here (Cin, Cout).
    w2 = jax.random.normal(keys[2], (Cin, Cout), jnp.float32) * jnp.sqrt(2.0 / Cout)

    # BatchNorm parameters (inference mode), deterministic synthetic values.
    g1 = 0.5 + jax.random.uniform(keys[3], (1, Cin), jnp.float32)
    be1 = 0.1 * jax.random.normal(keys[4], (1, Cin), jnp.float32)
    m1 = 0.1 * jax.random.normal(keys[5], (1, Cin), jnp.float32)
    v1 = 0.5 + jax.random.uniform(keys[6], (1, Cin), jnp.float32)
    g2 = 0.5 + jax.random.uniform(keys[7], (1, Cout), jnp.float32)
    be2 = 0.1 * jax.random.normal(keys[8], (1, Cout), jnp.float32)
    m2 = 0.1 * jax.random.normal(keys[9], (1, Cout), jnp.float32)
    v2 = 0.5 + jax.random.uniform(keys[10], (1, Cout), jnp.float32)

    # Fold BN into scale/bias.
    s1 = g1 / jnp.sqrt(v1 + eps)
    b1 = be1 - m1 * s1
    s2 = g2 / jnp.sqrt(v2 + eps)
    b2 = be2 - m2 * s2

    fn = jax.jit(functools.partial(sepconv_pallas, kernel_size=K, stride=1))
    out = fn(x, w1_taps, s1, b1, w2, s2, b2)
    out = jax.block_until_ready(out)

    ref = sepconv_ref(x, w1_taps, s1, b1, w2, s2, b2, kernel_size=K)
    assert out.shape == (N, Cout, H, W)
    assert jnp.allclose(out, ref, rtol=1e-3, atol=1e-3), (
        float(jnp.max(jnp.abs(out - ref))))

    print("KERNEL_OK")
</pallas_src>

<mosaic_0001>
module attributes {stable_mosaic.version = 11 : i64} {
  func.func @_sepconv_kernel(%arg0: i32, %arg1: memref<16x256xf32, #tpu.memory_space<vmem>>, %arg2: memref<9x16x256xf32, #tpu.memory_space<vmem>>, %arg3: memref<16x1xf32, #tpu.memory_space<vmem>>, %arg4: memref<32x16xf32, #tpu.memory_space<vmem>>, %arg5: memref<32x1xf32, #tpu.memory_space<vmem>>, %arg6: memref<32x256xf32, #tpu.memory_space<vmem>>) attributes {dimension_semantics = [#tpu.dimension_semantics<parallel>], iteration_bounds = array<i64: 1>, scalar_prefetch = 0 : i64, scratch_operands = 0 : i64, tpu.core_type = #tpu.core_type<tc>, window_params = [{transform_indices = @transform_0, window_bounds = array<i64: 16, 256>}, {pipeline_mode = #tpu.pipeline_mode<synchronous>, transform_indices = @transform_1, window_bounds = array<i64: 9, 16, 256>}, {pipeline_mode = #tpu.pipeline_mode<synchronous>, transform_indices = @transform_2, window_bounds = array<i64: 16, 1>}, {pipeline_mode = #tpu.pipeline_mode<synchronous>, transform_indices = @transform_3, window_bounds = array<i64: 32, 16>}, {pipeline_mode = #tpu.pipeline_mode<synchronous>, transform_indices = @transform_4, window_bounds = array<i64: 32, 1>}, {transform_indices = @transform_5, window_bounds = array<i64: 32, 256>}]} {
    %c0 = arith.constant 0 : index
    %c0_0 = arith.constant 0 : index
    %0 = vector.load %arg1[%c0, %c0_0] : memref<16x256xf32, #tpu.memory_space<vmem>>, vector<16x256xf32>
    %c17_i32 = arith.constant 17 : i32
    %1 = tpu.dynamic_rotate %0 by %c17_i32 dim 1 : vector<16x256xf32>, i32 -> vector<16x256xf32>
    %c0_1 = arith.constant 0 : index
    %c0_2 = arith.constant 0 : index
    %c0_3 = arith.constant 0 : index
    %2 = vector.load %arg2[%c0_1, %c0_2, %c0_3] : memref<9x16x256xf32, #tpu.memory_space<vmem>>, vector<1x16x256xf32>
    %3 = vector.shape_cast %2 : vector<1x16x256xf32> to vector<16x256xf32>
    %4 = arith.mulf %1, %3 : vector<16x256xf32>
    %c16_i32 = arith.constant 16 : i32
    %5 = tpu.dynamic_rotate %0 by %c16_i32 dim 1 : vector<16x256xf32>, i32 -> vector<16x256xf32>
    %c1 = arith.constant 1 : index
    %c0_4 = arith.constant 0 : index
    %c0_5 = arith.constant 0 : index
    %6 = vector.load %arg2[%c1, %c0_4, %c0_5] : memref<9x16x256xf32, #tpu.memory_space<vmem>>, vector<1x16x256xf32>
    %7 = vector.shape_cast %6 : vector<1x16x256xf32> to vector<16x256xf32>
    %8 = arith.mulf %5, %7 : vector<16x256xf32>
    %9 = arith.addf %4, %8 : vector<16x256xf32>
    %c15_i32 = arith.constant 15 : i32
    %10 = tpu.dynamic_rotate %0 by %c15_i32 dim 1 : vector<16x256xf32>, i32 -> vector<16x256xf32>
    %c2 = arith.constant 2 : index
    %c0_6 = arith.constant 0 : index
    %c0_7 = arith.constant 0 : index
    %11 = vector.load %arg2[%c2, %c0_6, %c0_7] : memref<9x16x256xf32, #tpu.memory_space<vmem>>, vector<1x16x256xf32>
    %12 = vector.shape_cast %11 : vector<1x16x256xf32> to vector<16x256xf32>
    %13 = arith.mulf %10, %12 : vector<16x256xf32>
    %14 = arith.addf %9, %13 : vector<16x256xf32>
    %c1_i32 = arith.constant 1 : i32
    %15 = tpu.dynamic_rotate %0 by %c1_i32 dim 1 : vector<16x256xf32>, i32 -> vector<16x256xf32>
    %c3 = arith.constant 3 : index
    %c0_8 = arith.constant 0 : index
    %c0_9 = arith.constant 0 : index
    %16 = vector.load %arg2[%c3, %c0_8, %c0_9] : memref<9x16x256xf32, #tpu.memory_space<vmem>>, vector<1x16x256xf32>
    %17 = vector.shape_cast %16 : vector<1x16x256xf32> to vector<16x256xf32>
    %18 = arith.mulf %15, %17 : vector<16x256xf32>
    %19 = arith.addf %14, %18 : vector<16x256xf32>
    %c4 = arith.constant 4 : index
    %c0_10 = arith.constant 0 : index
    %c0_11 = arith.constant 0 : index
    %20 = vector.load %arg2[%c4, %c0_10, %c0_11] : memref<9x16x256xf32, #tpu.memory_space<vmem>>, vector<1x16x256xf32>
    %21 = vector.shape_cast %20 : vector<1x16x256xf32> to vector<16x256xf32>
    %22 = arith.mulf %0, %21 : vector<16x256xf32>
    %23 = arith.addf %19, %22 : vector<16x256xf32>
    %c255_i32 = arith.constant 255 : i32
    %24 = tpu.dynamic_rotate %0 by %c255_i32 dim 1 : vector<16x256xf32>, i32 -> vector<16x256xf32>
    %c5 = arith.constant 5 : index
    %c0_12 = arith.constant 0 : index
    %c0_13 = arith.constant 0 : index
    %25 = vector.load %arg2[%c5, %c0_12, %c0_13] : memref<9x16x256xf32, #tpu.memory_space<vmem>>, vector<1x16x256xf32>
    %26 = vector.shape_cast %25 : vector<1x16x256xf32> to vector<16x256xf32>
    %27 = arith.mulf %24, %26 : vector<16x256xf32>
    %28 = arith.addf %23, %27 : vector<16x256xf32>
    %c241_i32 = arith.constant 241 : i32
    %29 = tpu.dynamic_rotate %0 by %c241_i32 dim 1 : vector<16x256xf32>, i32 -> vector<16x256xf32>
    %c6 = arith.constant 6 : index
    %c0_14 = arith.constant 0 : index
    %c0_15 = arith.constant 0 : index
    %30 = vector.load %arg2[%c6, %c0_14, %c0_15] : memref<9x16x256xf32, #tpu.memory_space<vmem>>, vector<1x16x256xf32>
    %31 = vector.shape_cast %30 : vector<1x16x256xf32> to vector<16x256xf32>
    %32 = arith.mulf %29, %31 : vector<16x256xf32>
    %33 = arith.addf %28, %32 : vector<16x256xf32>
    %c240_i32 = arith.constant 240 : i32
    %34 = tpu.dynamic_rotate %0 by %c240_i32 dim 1 : vector<16x256xf32>, i32 -> vector<16x256xf32>
    %c7 = arith.constant 7 : index
    %c0_16 = arith.constant 0 : index
    %c0_17 = arith.constant 0 : index
    %35 = vector.load %arg2[%c7, %c0_16, %c0_17] : memref<9x16x256xf32, #tpu.memory_space<vmem>>, vector<1x16x256xf32>
    %36 = vector.shape_cast %35 : vector<1x16x256xf32> to vector<16x256xf32>
    %37 = arith.mulf %34, %36 : vector<16x256xf32>
    %38 = arith.addf %33, %37 : vector<16x256xf32>
    %c239_i32 = arith.constant 239 : i32
    %39 = tpu.dynamic_rotate %0 by %c239_i32 dim 1 : vector<16x256xf32>, i32 -> vector<16x256xf32>
    %c8 = arith.constant 8 : index
    %c0_18 = arith.constant 0 : index
    %c0_19 = arith.constant 0 : index
    %40 = vector.load %arg2[%c8, %c0_18, %c0_19] : memref<9x16x256xf32, #tpu.memory_space<vmem>>, vector<1x16x256xf32>
    %41 = vector.shape_cast %40 : vector<1x16x256xf32> to vector<16x256xf32>
    %42 = arith.mulf %39, %41 : vector<16x256xf32>
    %43 = arith.addf %38, %42 : vector<16x256xf32>
    %c0_20 = arith.constant 0 : index
    %c0_21 = arith.constant 0 : index
    %44 = vector.load %arg3[%c0_20, %c0_21] : memref<16x1xf32, #tpu.memory_space<vmem>>, vector<16x1xf32>
    %45 = vector.broadcast %44 : vector<16x1xf32> to vector<16x256xf32>
    %46 = arith.addf %43, %45 : vector<16x256xf32>
    %cst = arith.constant 0.000000e+00 : f32
    %47 = vector.broadcast %cst : f32 to vector<16x256xf32>
    %48 = arith.maximumf %46, %47 : vector<16x256xf32>
    %c0_22 = arith.constant 0 : index
    %c0_23 = arith.constant 0 : index
    %49 = vector.load %arg4[%c0_22, %c0_23] : memref<32x16xf32, #tpu.memory_space<vmem>>, vector<32x16xf32>
    %cst_24 = arith.constant dense<0.000000e+00> : vector<32x256xf32>
    %50 = tpu.matmul %49, %48, %cst_24 {dimension_numbers = #tpu.dot_dimension_numbers<[1], [0], [0], [1], [0, 0, 1, 1], [], []>} : vector<32x16xf32>, vector<16x256xf32>, vector<32x256xf32> -> vector<32x256xf32>
    %c0_25 = arith.constant 0 : index
    %c0_26 = arith.constant 0 : index
    %51 = vector.load %arg5[%c0_25, %c0_26] : memref<32x1xf32, #tpu.memory_space<vmem>>, vector<32x1xf32>
    %52 = vector.broadcast %51 : vector<32x1xf32> to vector<32x256xf32>
    %53 = arith.addf %50, %52 : vector<32x256xf32>
    %c0_27 = arith.constant 0 : index
    %c0_28 = arith.constant 0 : index
    %54 = vector.load %arg6[%c0_27, %c0_28] : memref<32x256xf32, #tpu.memory_space<vmem>>, vector<32x256xf32>
    tpu.vector_store %arg6[%c0_27, %c0_28], %53 {strides = array<i32>} : memref<32x256xf32, #tpu.memory_space<vmem>>, vector<32x256xf32>,
    return
  }
  func.func @transform_0(%arg0: i32) -> (i32, i32) {
    %c0_i32 = arith.constant 0 : i32
    %c0_i32_0 = arith.constant 0 : i32
    return %arg0, %c0_i32 : i32, i32
  }
  func.func @transform_1(%arg0: i32) -> (i32, i32, i32) {
    %c0_i32 = arith.constant 0 : i32
    %c0_i32_0 = arith.constant 0 : i32
    %c0_i32_1 = arith.constant 0 : i32
    %c0_i32_2 = arith.constant 0 : i32
    return %c0_i32, %c0_i32_0, %c0_i32_1 : i32, i32, i32
  }
  func.func @transform_2(%arg0: i32) -> (i32, i32) {
    %c0_i32 = arith.constant 0 : i32
    %c0_i32_0 = arith.constant 0 : i32
    %c0_i32_1 = arith.constant 0 : i32
    return %c0_i32, %c0_i32_0 : i32, i32
  }
  func.func @transform_3(%arg0: i32) -> (i32, i32) {
    %c0_i32 = arith.constant 0 : i32
    %c0_i32_0 = arith.constant 0 : i32
    %c0_i32_1 = arith.constant 0 : i32
    return %c0_i32, %c0_i32_0 : i32, i32
  }
  func.func @transform_4(%arg0: i32) -> (i32, i32) {
    %c0_i32 = arith.constant 0 : i32
    %c0_i32_0 = arith.constant 0 : i32
    %c0_i32_1 = arith.constant 0 : i32
    return %c0_i32, %c0_i32_0 : i32, i32
  }
  func.func @transform_5(%arg0: i32) -> (i32, i32) {
    %c0_i32 = arith.constant 0 : i32
    %c0_i32_0 = arith.constant 0 : i32
    return %arg0, %c0_i32 : i32, i32
  }
}

</mosaic_0001>

<llo_original>
// kernel: sepconv_pallas.1
$region0: #{sepconv_pallas.1}
  #allocation0 [shape = 'u32[]', space=smem, size = 0x4, offset = 0x4, fixed_abs, tag = 'smem constant byte address 0x4 - core index']
  #allocation1 [shape = 'u32[144,128]{1,0:T(1,128)}', space=vmem, size = 0x12000, scoped, tag = 'internal scratch']
  %s0 = inlined_call_operand.vmem [shape: f32[16,256], index: 0, kind: input, shape index: {}]
  %s1 = inlined_call_operand.vmem [shape: f32[9,16,256], index: 1, kind: input, shape index: {}]
  %s2 = inlined_call_operand.vmem [shape: f32[16,1], index: 2, kind: input, shape index: {}]
  %s3 = inlined_call_operand.vmem [shape: f32[32,16], index: 3, kind: input, shape index: {}]
  %s4 = inlined_call_operand.vmem [shape: f32[32,1], index: 4, kind: input, shape index: {}]
  %s5 = inlined_call_operand.vmem [shape: f32[32,256], index: 5, kind: output, shape index: {}]
  %s6 = sld [smem:[#allocation0]]
  $region30: #{sepconv_pallas.1} parent=0
    _
  %s8 = ssub.s32 1, %s6
  %s9 = scalar_select 0, %s8, %s6
  // Predicated region
  $region2: #{sepconv_pallas.1} parent=0 // pred_check
    _
  $region3: #{sepconv_pallas.1} parent=0 // pred_check_branch
    %11 = sbr.rel (0) target = $region5
  $region4: #{sepconv_pallas.1} parent=0 // pred_region
    _
  $region5: #{sepconv_pallas.1} parent=0 // pred_fallthru
    _
  // Predicated region
  $region6: #{sepconv_pallas.1} parent=0 // pred_check
    _
  $region7: #{sepconv_pallas.1} parent=0 // pred_check_branch
    %13 = sbr.rel (0) target = $region9
  $region8: #{sepconv_pallas.1} parent=0 // pred_region
    _
  $region9: #{sepconv_pallas.1} parent=0 // pred_fallthru
    _
  // Predicated region
  $region10: #{sepconv_pallas.1} parent=0 // pred_check
    _
  $region11: #{sepconv_pallas.1} parent=0 // pred_check_branch
    %15 = sbr.rel (0) target = $region13
  $region12: #{sepconv_pallas.1} parent=0 // pred_region
    _
  $region13: #{sepconv_pallas.1} parent=0 // pred_fallthru
    _
  // Predicated region
  $region14: #{sepconv_pallas.1} parent=0 // pred_check
    _
  $region15: #{sepconv_pallas.1} parent=0 // pred_check_branch
    %17 = sbr.rel (0) target = $region17
  $region16: #{sepconv_pallas.1} parent=0 // pred_region
    _
  $region17: #{sepconv_pallas.1} parent=0 // pred_fallthru
    _
  // Predicated region
  $region18: #{sepconv_pallas.1} parent=0 // pred_check
    _
  $region19: #{sepconv_pallas.1} parent=0 // pred_check_branch
    %19 = sbr.rel (0) target = $region21
  $region20: #{sepconv_pallas.1} parent=0 // pred_region
    _
  $region21: #{sepconv_pallas.1} parent=0 // pred_fallthru
    _
  %v20 = vld [vmem:[%s0] sm:$0xff]
  %v21 = vld [vmem:[%s0 + $0x8] sm:$0xff]
  %v22 = vld [vmem:[%s0 + $0x10] sm:$0xff]
  %v23 = vld [vmem:[%s0 + $0x18] sm:$0xff]
  %24 = vrot.lane.b32.xlu0 %v20, 17
  %v25 = vpop.permute.xlu0 %24
  %26 = vrot.lane.b32.xlu0 %v22, 17
  %v27 = vpop.permute.xlu0 %26
  %28 = vrot.lane.b32.xlu0 %v21, 17
  %v29 = vpop.permute.xlu0 %28
  %30 = vrot.lane.b32.xlu0 %v23, 17
  %v31 = vpop.permute.xlu0 %30
  %v32 = vlaneseq
  %v33 = vand.u32 %v32, 127
  %vm34 = vcmp.lt.s32.totalorder %v33, 17
  %v35 = vsel %vm34, %v25, %v29
  %v36 = vsel %vm34, %v27, %v31
  %v37 = vsel %vm34, %v29, %v25
  %v38 = vsel %vm34, %v31, %v27
  %v39 = vld [vmem:[%s1] sm:$0xff]
  %v40 = vld [vmem:[%s1 + $0x8] sm:$0xff]
  %v41 = vld [vmem:[%s1 + $0x10] sm:$0xff]
  %v42 = vld [vmem:[%s1 + $0x18] sm:$0xff]
  %v43 = vmul.f32 %v37, %v39
  %v44 = vmul.f32 %v35, %v40
  %v45 = vmul.f32 %v38, %v41
  %v46 = vmul.f32 %v36, %v42
  %47 = vrot.lane.b32.xlu0 %v20, 16
  %v48 = vpop.permute.xlu0 %47
  %49 = vrot.lane.b32.xlu0 %v22, 16
  %v50 = vpop.permute.xlu0 %49
  %51 = vrot.lane.b32.xlu0 %v21, 16
  %v52 = vpop.permute.xlu0 %51
  %53 = vrot.lane.b32.xlu0 %v23, 16
  %v54 = vpop.permute.xlu0 %53
  %vm55 = vcmp.lt.s32.totalorder %v33, 16
  %v56 = vsel %vm55, %v48, %v52
  %v57 = vsel %vm55, %v50, %v54
  %v58 = vsel %vm55, %v52, %v48
  %v59 = vsel %vm55, %v54, %v50
  %s60 = scalar_lea.vmem %s1, 32
  %v61 = vld [vmem:[%s60] sm:$0xff]
  %v62 = vld [vmem:[%s60 + $0x8] sm:$0xff]
  %v63 = vld [vmem:[%s60 + $0x10] sm:$0xff]
  %v64 = vld [vmem:[%s60 + $0x18] sm:$0xff]
  %v65 = vmul.f32 %v58, %v61
  %v66 = vmul.f32 %v56, %v62
  %v67 = vmul.f32 %v59, %v63
  %v68 = vmul.f32 %v57, %v64
  %v69 = vadd.f32 %v43, %v65
  %v70 = vadd.f32 %v44, %v66
  %v71 = vadd.f32 %v45, %v67
  %v72 = vadd.f32 %v46, %v68
  %73 = vrot.lane.b32.xlu0 %v20, 15
  %v74 = vpop.permute.xlu0 %73
  %75 = vrot.lane.b32.xlu0 %v22, 15
  %v76 = vpop.permute.xlu0 %75
  %77 = vrot.lane.b32.xlu0 %v21, 15
  %v78 = vpop.permute.xlu0 %77
  %79 = vrot.lane.b32.xlu0 %v23, 15
  %v80 = vpop.permute.xlu0 %79
  %vm81 = vcmp.lt.s32.totalorder %v33, 15
  %v82 = vsel %vm81, %v74, %v78
  %v83 = vsel %vm81, %v76, %v80
  %v84 = vsel %vm81, %v78, %v74
  %v85 = vsel %vm81, %v80, %v76
  %s86 = scalar_lea.vmem %s1, 64
  %v87 = vld [vmem:[%s86] sm:$0xff]
  %v88 = vld [vmem:[%s86 + $0x8] sm:$0xff]
  %v89 = vld [vmem:[%s86 + $0x10] sm:$0xff]
  %v90 = vld [vmem:[%s86 + $0x18] sm:$0xff]
  %v91 = vmul.f32 %v84, %v87
  %v92 = vmul.f32 %v82, %v88
  %v93 = vmul.f32 %v85, %v89
  %v94 = vmul.f32 %v83, %v90
  %v95 = vadd.f32 %v69, %v91
  %v96 = vadd.f32 %v70, %v92
  %v97 = vadd.f32 %v71, %v93
  %v98 = vadd.f32 %v72, %v94
  %99 = vrot.lane.b32.xlu0 %v20, 1
  %v100 = vpop.permute.xlu0 %99
  %101 = vrot.lane.b32.xlu0 %v22, 1
  %v102 = vpop.permute.xlu0 %101
  %103 = vrot.lane.b32.xlu0 %v21, 1
  %v104 = vpop.permute.xlu0 %103
  %105 = vrot.lane.b32.xlu0 %v23, 1
  %v106 = vpop.permute.xlu0 %105
  %vm107 = vcmp.lt.s32.totalorder %v33, 1
  %v108 = vsel %vm107, %v100, %v104
  %v109 = vsel %vm107, %v102, %v106
  %v110 = vsel %vm107, %v104, %v100
  %v111 = vsel %vm107, %v106, %v102
  %s112 = scalar_lea.vmem %s1, 96
  %v113 = vld [vmem:[%s112] sm:$0xff]
  %v114 = vld [vmem:[%s112 + $0x8] sm:$0xff]
  %v115 = vld [vmem:[%s112 + $0x10] sm:$0xff]
  %v116 = vld [vmem:[%s112 + $0x18] sm:$0xff]
  %v117 = vmul.f32 %v110, %v113
  %v118 = vmul.f32 %v108, %v114
  %v119 = vmul.f32 %v111, %v115
  %v120 = vmul.f32 %v109, %v116
  %v121 = vadd.f32 %v95, %v117
  %v122 = vadd.f32 %v96, %v118
  %v123 = vadd.f32 %v97, %v119
  %v124 = vadd.f32 %v98, %v120
  %s125 = scalar_lea.vmem %s1, 128
  %v126 = vld [vmem:[%s125] sm:$0xff]
  %v127 = vld [vmem:[%s125 + $0x8] sm:$0xff]
  %v128 = vld [vmem:[%s125 + $0x10] sm:$0xff]
  %v129 = vld [vmem:[%s125 + $0x18] sm:$0xff]
  %v130 = vmul.f32 %v20, %v126
  %v131 = vmul.f32 %v21, %v127
  %v132 = vmul.f32 %v22, %v128
  %v133 = vmul.f32 %v23, %v129
  %v134 = vadd.f32 %v121, %v130
  %v135 = vadd.f32 %v122, %v131
  %v136 = vadd.f32 %v123, %v132
  %v137 = vadd.f32 %v124, %v133
  %138 = vrot.lane.b32.xlu0 %v20, 127
  %v139 = vpop.permute.xlu0 %138
  %140 = vrot.lane.b32.xlu0 %v22, 127
  %v141 = vpop.permute.xlu0 %140
  %142 = vrot.lane.b32.xlu0 %v21, 127
  %v143 = vpop.permute.xlu0 %142
  %144 = vrot.lane.b32.xlu0 %v23, 127
  %v145 = vpop.permute.xlu0 %144
  %vm146 = vcmp.lt.s32.totalorder %v33, 127
  %v147 = vsel %vm146, %v139, %v143
  %v148 = vsel %vm146, %v141, %v145
  %v149 = vsel %vm146, %v143, %v139
  %v150 = vsel %vm146, %v145, %v141
  %s151 = scalar_lea.vmem %s1, 160
  %v152 = vld [vmem:[%s151] sm:$0xff]
  %v153 = vld [vmem:[%s151 + $0x8] sm:$0xff]
  %v154 = vld [vmem:[%s151 + $0x10] sm:$0xff]
  %v155 = vld [vmem:[%s151 + $0x18] sm:$0xff]
  %v156 = vmul.f32 %v147, %v152
  %v157 = vmul.f32 %v149, %v153
  %v158 = vmul.f32 %v148, %v154
  %v159 = vmul.f32 %v150, %v155
  %v160 = vadd.f32 %v134, %v156
  %v161 = vadd.f32 %v135, %v157
  %v162 = vadd.f32 %v136, %v158
  %v163 = vadd.f32 %v137, %v159
  %164 = vrot.lane.b32.xlu0 %v20, 113
  %v165 = vpop.permute.xlu0 %164
  %166 = vrot.lane.b32.xlu0 %v22, 113
  %v167 = vpop.permute.xlu0 %166
  %168 = vrot.lane.b32.xlu0 %v21, 113
  %v169 = vpop.permute.xlu0 %168
  %170 = vrot.lane.b32.xlu0 %v23, 113
  %v171 = vpop.permute.xlu0 %170
  %vm172 = vcmp.lt.s32.totalorder %v33, 113
  %v173 = vsel %vm172, %v165, %v169
  %v174 = vsel %vm172, %v167, %v171
  %v175 = vsel %vm172, %v169, %v165
  %v176 = vsel %vm172, %v171, %v167
  %s177 = scalar_lea.vmem %s1, 192
  %v178 = vld [vmem:[%s177] sm:$0xff]
  %v179 = vld [vmem:[%s177 + $0x8] sm:$0xff]
  %v180 = vld [vmem:[%s177 + $0x10] sm:$0xff]
  %v181 = vld [vmem:[%s177 + $0x18] sm:$0xff]
  %v182 = vmul.f32 %v173, %v178
  %v183 = vmul.f32 %v175, %v179
  %v184 = vmul.f32 %v174, %v180
  %v185 = vmul.f32 %v176, %v181
  %v186 = vadd.f32 %v160, %v182
  %v187 = vadd.f32 %v161, %v183
  %v188 = vadd.f32 %v162, %v184
  %v189 = vadd.f32 %v163, %v185
  %190 = vrot.lane.b32.xlu0 %v20, 112
  %v191 = vpop.permute.xlu0 %190
  %192 = vrot.lane.b32.xlu0 %v22, 112
  %v193 = vpop.permute.xlu0 %192
  %194 = vrot.lane.b32.xlu0 %v21, 112
  %v195 = vpop.permute.xlu0 %194
  %196 = vrot.lane.b32.xlu0 %v23, 112
  %v197 = vpop.permute.xlu0 %196
  %vm198 = vcmp.lt.s32.totalorder %v33, 112
  %v199 = vsel %vm198, %v191, %v195
  %v200 = vsel %vm198, %v193, %v197
  %v201 = vsel %vm198, %v195, %v191
  %v202 = vsel %vm198, %v197, %v193
  %s203 = scalar_lea.vmem %s1, 224
  %v204 = vld [vmem:[%s203] sm:$0xff]
  %v205 = vld [vmem:[%s203 + $0x8] sm:$0xff]
  %v206 = vld [vmem:[%s203 + $0x10] sm:$0xff]
  %v207 = vld [vmem:[%s203 + $0x18] sm:$0xff]
  %v208 = vmul.f32 %v199, %v204
  %v209 = vmul.f32 %v201, %v205
  %v210 = vmul.f32 %v200, %v206
  %v211 = vmul.f32 %v202, %v207
  %v212 = vadd.f32 %v186, %v208
  %v213 = vadd.f32 %v187, %v209
  %v214 = vadd.f32 %v188, %v210
  %v215 = vadd.f32 %v189, %v211
  %216 = vrot.lane.b32.xlu0 %v20, 111
  %v217 = vpop.permute.xlu0 %216
  %218 = vrot.lane.b32.xlu0 %v22, 111
  %v219 = vpop.permute.xlu0 %218
  %220 = vrot.lane.b32.xlu0 %v21, 111
  %v221 = vpop.permute.xlu0 %220
  %222 = vrot.lane.b32.xlu0 %v23, 111
  %v223 = vpop.permute.xlu0 %222
  %vm224 = vcmp.lt.s32.totalorder %v33, 111
  %v225 = vsel %vm224, %v217, %v221
  %v226 = vsel %vm224, %v219, %v223
  %v227 = vsel %vm224, %v221, %v217
  %v228 = vsel %vm224, %v223, %v219
  %s229 = scalar_lea.vmem %s1, 256
  %v230 = vld [vmem:[%s229] sm:$0xff]
  %v231 = vld [vmem:[%s229 + $0x8] sm:$0xff]
  %v232 = vld [vmem:[%s229 + $0x10] sm:$0xff]
  %v233 = vld [vmem:[%s229 + $0x18] sm:$0xff]
  %v234 = vmul.f32 %v225, %v230
  %v235 = vmul.f32 %v227, %v231
  %v236 = vmul.f32 %v226, %v232
  %v237 = vmul.f32 %v228, %v233
  %v238 = vadd.f32 %v212, %v234
  %v239 = vadd.f32 %v213, %v235
  %v240 = vadd.f32 %v214, %v236
  %v241 = vadd.f32 %v215, %v237
  %v242 = vld [vmem:[%s2] sm:$0xff]
  %v243 = vld [vmem:[%s2 + $0x8] sm:$0xff]
  %245 = vset.pattern.permute.xlu0 0
  %246 = vperm.xlu0 %245, %v242
  %v247 = vpop.permute.xlu0 %246
  %250 = vset.pattern.permute.xlu0 0
  %251 = vperm.xlu0 %250, %v243
  %v252 = vpop.permute.xlu0 %251
  %v254 = vadd.f32 %v238, %v247
  %v255 = vadd.f32 %v239, %v247
  %v256 = vadd.f32 %v240, %v252
  %v257 = vadd.f32 %v241, %v252
  %v258 = vmax.f32 %v254, 0.0
  %v259 = vmax.f32 %v255, 0.0
  %v260 = vmax.f32 %v256, 0.0
  %v261 = vmax.f32 %v257, 0.0
  %v262 = vld [vmem:[%s3] sm:$0xff]
  %v263 = vld [vmem:[%s3 + $0x8] sm:$0xff]
  %v264 = vld [vmem:[%s3 + $0x10] sm:$0xff]
  %v265 = vld [vmem:[%s3 + $0x18] sm:$0xff]
  %v266 = vld [vmem:[%s4] sm:$0xff]
  %v267 = vld [vmem:[%s4 + $0x8] sm:$0xff]
  %v268 = vld [vmem:[%s4 + $0x10] sm:$0xff]
  %v269 = vld [vmem:[%s4 + $0x18] sm:$0xff]
  %271 = vset.pattern.permute.xlu0 0
  %272 = vperm.xlu0 %271, %v266
  %v273 = vpop.permute.xlu0 %272
  %276 = vset.pattern.permute.xlu0 0
  %277 = vperm.xlu0 %276, %v267
  %v278 = vpop.permute.xlu0 %277
  %281 = vset.pattern.permute.xlu0 0
  %282 = vperm.xlu0 %281, %v268
  %v283 = vpop.permute.xlu0 %282
  %286 = vset.pattern.permute.xlu0 0
  %287 = vperm.xlu0 %286, %v269
  %v288 = vpop.permute.xlu0 %287
  %vm290 = vcmask 130048
  %v292 = vsel %vm290, %v262, 0
  %v295 = vsel %vm290, %v263, 0
  %v298 = vsel %vm290, %v264, 0
  %v301 = vsel %vm290, %v265, 0
  %303 = vmatprep.subr.mxu0 %v259
  %304 = vmatpush1.msra.mxu0 %v258
  %305 = vmatprep.subr.mxu0 %v261
  %306 = vmatpush1.msra.mxu0 %v260
  %307 = vmatprep.subr.mxu0 0.0
  %308 = vmatpush1.msra.mxu0 0.0
  %309 = vmatprep.subr.mxu0 0.0
  %310 = vmatpush1.msra.mxu0 0.0
  %311 = vmatprep.subr.mxu0 0.0
  %312 = vmatpush1.msra.mxu0 0.0
  %313 = vmatprep.subr.mxu0 0.0
  %314 = vmatpush1.msra.mxu0 0.0
  %315 = vmatprep.subr.mxu0 0.0
  %316 = vmatpush1.msra.mxu0 0.0
  %317 = vmatprep.subr.mxu0 0.0
  %318 = vmatpush1.msra.mxu0 0.0
  %319 = vmatprep.subr.mxu0 0.0
  %320 = vmatpush1.msra.mxu0 0.0
  %321 = vmatprep.subr.mxu0 0.0
  %322 = vmatpush1.msra.mxu0 0.0
  %323 = vmatprep.subr.mxu0 0.0
  %324 = vmatpush1.msra.mxu0 0.0
  %325 = vmatprep.subr.mxu0 0.0
  %326 = vmatpush1.msra.mxu0 0.0
  %327 = vmatprep.subr.mxu0 0.0
  %328 = vmatpush1.msra.mxu0 0.0
  %329 = vmatprep.subr.mxu0 0.0
  %330 = vmatpush1.msra.mxu0 0.0
  %331 = vmatprep.subr.mxu0 0.0
  %332 = vmatpush1.msra.mxu0 0.0
  %333 = vmatprep.subr.mxu0 0.0
  %334 = vmatpush1.msra.mxu0 0.0
  %335 = vmatprep.subr.mxu0 0.0
  %336 = vmatpush1.msra.mxu0 0.0
  %337 = vmatprep.subr.mxu0 0.0
  %338 = vmatpush1.msra.mxu0 0.0
  %339 = vmatprep.subr.mxu0 0.0
  %340 = vmatpush1.msra.mxu0 0.0
  %341 = vmatprep.subr.mxu0 0.0
  %342 = vmatpush1.msra.mxu0 0.0
  %343 = vmatprep.subr.mxu0 0.0
  %344 = vmatpush1.msra.mxu0 0.0
  %345 = vmatprep.subr.mxu0 0.0
  %346 = vmatpush1.msra.mxu0 0.0
  %347 = vmatprep.subr.mxu0 0.0
  %348 = vmatpush1.msra.mxu0 0.0
  %349 = vmatprep.subr.mxu0 0.0
  %350 = vmatpush1.msra.mxu0 0.0
  %351 = vmatprep.subr.mxu0 0.0
  %352 = vmatpush1.msra.mxu0 0.0
  %353 = vmatprep.subr.mxu0 0.0
  %354 = vmatpush1.msra.mxu0 0.0
  %355 = vmatprep.subr.mxu0 0.0
  %356 = vmatpush1.msra.mxu0 0.0
  %357 = vmatprep.subr.mxu0 0.0
  %358 = vmatpush1.msra.mxu0 0.0
  %359 = vmatprep.subr.mxu0 0.0
  %360 = vmatpush1.msra.mxu0 0.0
  %361 = vmatprep.subr.mxu0 0.0
  %362 = vmatpush1.msra.mxu0 0.0
  %363 = vmatprep.subr.mxu0 0.0
  %364 = vmatpush1.msra.mxu0 0.0
  %365 = vmatprep.subr.mxu0 0.0
  %366 = vmatpush1.msra.mxu0 0.0
  %367 = vmatprep.mubr.f32.mxu0 0.0
  %368 = vmatmul.mubr.f32.gmra.mrb[0].mxu0 %v292
  %v369 = vpop.f32.mrb[0].mxu0
  %v370 = vadd.f32 %v273, %v369
  %v371 = vpop.f32.mrb[0].mxu0
  %v372 = vadd.f32 %v273, %v371
  %373 = vmatprep.mubr.f32.mxu0 0.0
  %374 = vmatmul.mubr.f32.gmra.mrb[0].mxu0 %v295
  %v375 = vpop.f32.mrb[0].mxu0
  %v376 = vadd.f32 %v278, %v375
  %v377 = vpop.f32.mrb[0].mxu0
  %v378 = vadd.f32 %v278, %v377
  %379 = vmatprep.mubr.f32.mxu0 0.0
  %380 = vmatmul.mubr.f32.gmra.mrb[0].mxu0 %v298
  %v381 = vpop.f32.mrb[0].mxu0
  %v382 = vadd.f32 %v283, %v381
  %v383 = vpop.f32.mrb[0].mxu0
  %v384 = vadd.f32 %v283, %v383
  %385 = vmatprep.mubr.f32.mxu0 0.0
  %386 = vmatmul.mubr.f32.gmra.mrb[0].mxu0 %v301
  %v387 = vpop.f32.mrb[0].mxu0
  %v388 = vadd.f32 %v288, %v387
  %v389 = vpop.f32.mrb[0].mxu0
  %v390 = vadd.f32 %v288, %v389
  %391 = vdwg.mxu0
  %392 = vst [vmem:[%s5] sm:$0xff] %v370
  %393 = vst [vmem:[%s5 + $0x8] sm:$0xff] %v372
  %394 = vst [vmem:[%s5 + $0x10] sm:$0xff] %v376
  %395 = vst [vmem:[%s5 + $0x18] sm:$0xff] %v378
  %396 = vst [vmem:[%s5 + $0x20] sm:$0xff] %v382
  %397 = vst [vmem:[%s5 + $0x28] sm:$0xff] %v384
  %398 = vst [vmem:[%s5 + $0x30] sm:$0xff] %v388
  %399 = vst [vmem:[%s5 + $0x38] sm:$0xff] %v390
  // Predicated region
  $region22: #{sepconv_pallas.1} parent=0 // pred_check
    _
  $region23: #{sepconv_pallas.1} parent=0 // pred_check_branch
    %401 = sbr.rel (0) target = $region25
  $region24: #{sepconv_pallas.1} parent=0 // pred_region
    _
  $region25: #{sepconv_pallas.1} parent=0 // pred_fallthru
    _
  // Predicated region
  $region26: #{sepconv_pallas.1} parent=0 // pred_check
    _
  $region27: #{sepconv_pallas.1} parent=0 // pred_check_branch
    %403 = sbr.rel (0) target = $region29
  $region28: #{sepconv_pallas.1} parent=0 // pred_region
    _
  $region29: #{sepconv_pallas.1} parent=0 // pred_fallthru
    _

</llo_original>
